<compile_context>
chip_gen: v5e
topology: v5e:2x2
jax: 0.10.0
libtpu: 0.0.40
codegen_flags: <defaults>
</compile_context>

<pallas_src>
import jax
import jax.numpy as jnp
from jax.experimental import pallas as pl
from jax.experimental.pallas import tpu as pltpu

LN_EPS = 1e-5  # nn.LayerNorm default (matches adapter_config.layer_norm_eps)


def _round_up(a, b):
    return (a + b - 1) // b * b


def _itemsize(dt):
    return jnp.dtype(dt).itemsize


def _make_adapter_kernel(emit_up):
    def kernel(x_ref, res_ref, ln_w_ref, ln_b_ref, wd_ref, bd_ref,
               wu_ref, bu_ref, *out_refs):
        out_ref = out_refs[0]
        down_ref = out_refs[1]

        # LayerNorm over the hidden (lane) axis -- statistics kept in f32, but the
        # normalized value is cast to the MXU dtype immediately so only x/centered
        # and the (tile, 1) stats stay live in f32.
        x = x_ref[...].astype(jnp.float32)
        mean = jnp.mean(x, axis=-1, keepdims=True)
        centered = x - mean
        inv_std = jax.lax.rsqrt(
            jnp.mean(centered * centered, axis=-1, keepdims=True) + LN_EPS)
        xn = ((centered * inv_std) * ln_w_ref[...].astype(jnp.float32)
              + ln_b_ref[...].astype(jnp.float32)).astype(wd_ref.dtype)

        # Down projection + ReLU on the MXU (bf16 inputs, f32 accumulation).
        down = jnp.dot(xn, wd_ref[...], preferred_element_type=jnp.float32)
        down = jnp.maximum(down + bd_ref[...].astype(jnp.float32), 0.0)

        # Up projection.
        up = jnp.dot(down.astype(wu_ref.dtype), wu_ref[...],
                     preferred_element_type=jnp.float32)
        up = up + bu_ref[...].astype(jnp.float32)

        # Residual add (residual_before_ln=True, no post-LN).
        out = up + res_ref[...].astype(jnp.float32)

        out_ref[...] = out.astype(out_ref.dtype)
        down_ref[...] = down.astype(down_ref.dtype)
        if emit_up:
            out_refs[2][...] = up.astype(out_refs[2].dtype)

    return kernel


def adapter_forward(x, residual_input, params, *, max_tile_n=1024, return_up=True,
                    compute_dtype=jnp.bfloat16, aux_dtype=jnp.bfloat16,
                    io_dtype=None):
    """x, residual_input: (batch, seq, hidden). Returns (output, down, up).

    `up` is None when return_up=False (saves one N*H HBM writeback).
    `io_dtype=jnp.bfloat16` halves the x/residual/out HBM traffic.
    residual_input's buffer is aliased into `output` (do not reuse it afterwards)."""
    B, S, H = x.shape
    N = B * S
    D = params["w_down"].shape[1]

    if D == 1:  # mirrors the module's degenerate down_sample<1 early-return path
        return x, None, None

    x2 = x.reshape(N, H)
    r2 = residual_input.reshape(N, H)
    if io_dtype is not None:
        x2 = x2.astype(io_dtype)
        r2 = r2.astype(io_dtype)
    out_dtype = r2.dtype  # must match residual for input_output_aliases

    # --- lane-align D: zero-pad W_down columns / b_down / W_up rows to Dp ---
    Dp = _round_up(D, 128)
    wd = params["w_down"]
    bd = params["b_down"]
    wu = params["w_up"]
    if Dp != D:
        wd = jnp.pad(wd, ((0, 0), (0, Dp - D)))
        bd = jnp.pad(bd, ((0, 0), (0, Dp - D)))
        wu = jnp.pad(wu, ((0, Dp - D), (0, 0)))
    wd = wd.astype(compute_dtype)   # bf16 MXU fast path, halves weight DMA bytes
    wu = wu.astype(compute_dtype)

    # --- generation-aware tile sizing (v7x: 64 MiB VMEM, v5e/v6e: 128 MiB) ---
    try:
        vmem_cap = int(pltpu.get_tpu_info().vmem_capacity_bytes)
    except Exception:
        vmem_cap = 128 * 1024 * 1024

    # Bytes per tile row: double-buffered I/O blocks + f32 in-kernel temporaries.
    per_row = 2 * H * (_itemsize(x2.dtype) + _itemsize(r2.dtype) + _itemsize(out_dtype))
    per_row += 2 * Dp * _itemsize(aux_dtype)
    if return_up:
        per_row += 2 * H * _itemsize(aux_dtype)
    per_row += (3 * H + Dp) * 4
    # Grid-invariant weights/biases; x2 as safety in case single-buffering falls
    # back to default double buffering.
    const_bytes = 2 * ((H * Dp + Dp * H) * _itemsize(compute_dtype) + (3 * H + Dp) * 4)

    budget = int(vmem_cap * 0.7)
    tile_cap = max(8, (budget - const_bytes) // max(per_row, 1))
    tile_cap = max(8, (min(int(max_tile_n), tile_cap) // 8) * 8)

    if N <= 8:
        tile_n = N                         # block == full row dim (always legal)
    else:
        tile_n = min(tile_cap, N if N % 8 == 0 else (N // 8) * 8)
        tile_n = max(8, (tile_n // 8) * 8)
        # v7x guard: 64 MiB VMEM parts have 2 TensorCores -> keep the grid >= 2.
        if vmem_cap <= 64 * 1024 * 1024 and N >= 16:
            tile_n = min(tile_n, max(8, _round_up(pl.cdiv(N, 2), 8)))

    grid = (pl.cdiv(N, tile_n),)
    vmem_limit = int(vmem_cap * 0.85)

    row_h = pl.BlockSpec((tile_n, H), lambda i: (i, 0))
    row_d = pl.BlockSpec((tile_n, Dp), lambda i: (i, 0))

    out_specs = [row_h, row_d]
    out_shape = [jax.ShapeDtypeStruct((N, H), out_dtype),
                 jax.ShapeDtypeStruct((N, Dp), aux_dtype)]
    if return_up:
        out_specs.append(row_h)
        out_shape.append(jax.ShapeDtypeStruct((N, H), aux_dtype))

    def _run(single_buffer_consts):
        if single_buffer_consts:
            # Grid-invariant operands: single VMEM buffer (no re-fetch, no
            # double buffering) -> halves weight VMEM footprint.
            def const(shape):
                return pl.BlockSpec(shape, lambda i: (0, 0),
                                    pipeline_mode=pl.Buffered(1))
        else:
            def const(shape):
                return pl.BlockSpec(shape, lambda i: (0, 0))

        in_specs = [
            row_h,             # x
            row_h,             # residual
            const((1, H)),     # ln weight
            const((1, H)),     # ln bias
            const((H, Dp)),    # W_down (pre-transposed, zero-padded)
            const((1, Dp)),    # b_down
            const((Dp, H)),    # W_up (pre-transposed, zero-padded)
            const((1, H)),     # b_up
        ]
        return pl.pallas_call(
            _make_adapter_kernel(return_up),
            grid=grid,
            in_specs=in_specs,
            out_specs=out_specs,
            out_shape=out_shape,
            # residual buffer is dead after the add -> reuse it as `out`.
            input_output_aliases={1: 0},
            compiler_params=pltpu.CompilerParams(
                dimension_semantics=("parallel",),
                vmem_limit_bytes=vmem_limit,
            ),
        )(x2, r2, params["ln_w"], params["ln_b"], wd, bd, wu, params["b_up"])

    try:
        results = _run(True)
    except Exception:
        # Older JAX without BlockSpec(pipeline_mode=...) / Buffered(1): fall back
        # to default-buffered constant specs (correct, slightly more VMEM).
        results = _run(False)

    if return_up:
        out2, down2, up2 = results
    else:
        out2, down2 = results
        up2 = None

    if Dp != D:
        down2 = down2[:, :D]   # drop the zero columns introduced by lane padding

    out = out2.reshape(B, S, H)
    down = down2.reshape(B, S, D)
    up = up2.reshape(B, S, H) if return_up else None
    return out, down, up


def init_params(key, input_size, down_sample):
    """Deterministic init matching Adapter.init_bert_weights:
    Linear weights ~ N(0, 0.02), biases 0, LayerNorm weight 1 / bias 0."""
    k1, k2 = jax.random.split(key)
    return {
        "ln_w": jnp.ones((1, input_size), jnp.float32),
        "ln_b": jnp.zeros((1, input_size), jnp.float32),
        # stored already transposed relative to nn.Linear.weight (out, in)
        "w_down": 0.02 * jax.random.normal(k1, (input_size, down_sample), jnp.float32),
        "b_down": jnp.zeros((1, down_sample), jnp.float32),
        "w_up": 0.02 * jax.random.normal(k2, (down_sample, input_size), jnp.float32),
        "b_up": jnp.zeros((1, input_size), jnp.float32),
    }


def _reference(x, residual, params, compute_dtype=jnp.bfloat16):
    """Pure-JAX reference with the same bf16 matmul / f32-accumulate policy."""
    xf = x.astype(jnp.float32)
    mean = jnp.mean(xf, axis=-1, keepdims=True)
    var = jnp.mean((xf - mean) ** 2, axis=-1, keepdims=True)
    xn = (xf - mean) * jax.lax.rsqrt(var + LN_EPS)
    xn = xn * params["ln_w"][0] + params["ln_b"][0]
    wd = params["w_down"].astype(compute_dtype)
    wu = params["w_up"].astype(compute_dtype)
    down = jnp.dot(xn.astype(compute_dtype), wd,
                   preferred_element_type=jnp.float32) + params["b_down"][0]
    down = jnp.maximum(down, 0.0)
    up = jnp.dot(down.astype(compute_dtype), wu,
                 preferred_element_type=jnp.float32) + params["b_up"][0]
    out = up + residual.astype(jnp.float32)
    return out, down, up


if __name__ == "__main__":
    batch, seq, hidden = 2, 8, 32
    down_sample = hidden // 2  # 16

    key = jax.random.PRNGKey(0)
    kx, kr, kp, kx2, kr2 = jax.random.split(key, 5)
    x = jax.random.normal(kx, (batch, seq, hidden), jnp.float32)
    residual_input = jax.random.normal(kr, (batch, seq, hidden), jnp.float32)
    params = init_params(kp, hidden, down_sample)

    # Compute the reference first: residual_input's buffer may be donated into
    # `out` by input_output_aliases.
    ref_out, ref_down, ref_up = _reference(x, residual_input, params)
    jax.block_until_ready((ref_out, ref_down, ref_up))

    out, down, up = adapter_forward(x, residual_input, params)
    jax.block_until_ready((out, down, up))

    assert out.shape == (batch, seq, hidden)
    assert down.shape == (batch, seq, down_sample)
    assert up.shape == (batch, seq, hidden)
    assert jnp.allclose(out, ref_out, atol=2e-3, rtol=2e-3)
    assert jnp.allclose(down.astype(jnp.float32), ref_down, atol=2e-2, rtol=2e-2)
    assert jnp.allclose(up.astype(jnp.float32), ref_up, atol=2e-2, rtol=2e-2)

    # Bandwidth-trimmed variant: ragged row count (N=14), bf16 I/O, no `up` writeback.
    seq_r = 7
    x_r = jax.random.normal(kx2, (batch, seq_r, hidden), jnp.float32)
    res_r = jax.random.normal(kr2, (batch, seq_r, hidden), jnp.float32)
    # Reference sees the same bf16-rounded inputs the kernel will be fed.
    x_rb = x_r.astype(jnp.bfloat16).astype(jnp.float32)
    res_rb = res_r.astype(jnp.bfloat16).astype(jnp.float32)
    ref_out2, ref_down2, _ = _reference(x_rb, res_rb, params)
    jax.block_until_ready((ref_out2, ref_down2))

    out2, down2, up2 = adapter_forward(x_r, res_r, params, return_up=False,
                                       io_dtype=jnp.bfloat16)
    jax.block_until_ready((out2, down2))
    assert up2 is None
    assert out2.shape == (batch, seq_r, hidden)
    assert down2.shape == (batch, seq_r, down_sample)
    assert jnp.allclose(out2.astype(jnp.float32), ref_out2, atol=5e-2, rtol=5e-2)
    assert jnp.allclose(down2.astype(jnp.float32), ref_down2, atol=5e-2, rtol=5e-2)

    print("KERNEL_OK")
</pallas_src>

<mosaic_0001>
module attributes {stable_mosaic.version = 11 : i64} {
  func.func @kernel(%arg0: i32, %arg1: memref<16x32xf32, #tpu.memory_space<vmem>>, %arg2: memref<16x32xf32, #tpu.memory_space<vmem>>, %arg3: memref<1x32xf32, #tpu.memory_space<vmem>>, %arg4: memref<1x32xf32, #tpu.memory_space<vmem>>, %arg5: memref<32x128xbf16, #tpu.memory_space<vmem>>, %arg6: memref<1x128xf32, #tpu.memory_space<vmem>>, %arg7: memref<128x32xbf16, #tpu.memory_space<vmem>>, %arg8: memref<1x32xf32, #tpu.memory_space<vmem>>, %arg9: memref<16x32xf32, #tpu.memory_space<vmem>>, %arg10: memref<16x128xbf16, #tpu.memory_space<vmem>>, %arg11: memref<16x32xbf16, #tpu.memory_space<vmem>>) attributes {dimension_semantics = [#tpu.dimension_semantics<parallel>], iteration_bounds = array<i64: 1>, scalar_prefetch = 0 : i64, scratch_operands = 0 : i64, tpu.core_type = #tpu.core_type<tc>, window_params = [{transform_indices = @transform_0, window_bounds = array<i64: 16, 32>}, {transform_indices = @transform_1, window_bounds = array<i64: 16, 32>}, {pipeline_mode = #tpu.pipeline_mode<synchronous>, transform_indices = @transform_2, window_bounds = array<i64: 1, 32>}, {pipeline_mode = #tpu.pipeline_mode<synchronous>, transform_indices = @transform_3, window_bounds = array<i64: 1, 32>}, {pipeline_mode = #tpu.pipeline_mode<synchronous>, transform_indices = @transform_4, window_bounds = array<i64: 32, 128>}, {pipeline_mode = #tpu.pipeline_mode<synchronous>, transform_indices = @transform_5, window_bounds = array<i64: 1, 128>}, {pipeline_mode = #tpu.pipeline_mode<synchronous>, transform_indices = @transform_6, window_bounds = array<i64: 128, 32>}, {pipeline_mode = #tpu.pipeline_mode<synchronous>, transform_indices = @transform_7, window_bounds = array<i64: 1, 32>}, {transform_indices = @transform_8, window_bounds = array<i64: 16, 32>}, {transform_indices = @transform_9, window_bounds = array<i64: 16, 128>}, {transform_indices = @transform_10, window_bounds = array<i64: 16, 32>}]} {
    %c0 = arith.constant 0 : index
    %c0_0 = arith.constant 0 : index
    %0 = vector.load %arg1[%c0, %c0_0] : memref<16x32xf32, #tpu.memory_space<vmem>>, vector<16x32xf32>
    %cst = arith.constant dense<0.000000e+00> : vector<16xf32>
    %1 = vector.multi_reduction <add>, %0, %cst [1] : vector<16x32xf32> to vector<16xf32>
    %2 = vector.shape_cast %1 : vector<16xf32> to vector<16x1xf32>
    %cst_1 = arith.constant 3.200000e+01 : f32
    %3 = vector.broadcast %cst_1 : f32 to vector<16x1xf32>
    %4 = arith.divf %2, %3 : vector<16x1xf32>
    %5 = vector.broadcast %4 : vector<16x1xf32> to vector<16x32xf32>
    %6 = arith.subf %0, %5 : vector<16x32xf32>
    %7 = arith.mulf %6, %6 : vector<16x32xf32>
    %cst_2 = arith.constant dense<0.000000e+00> : vector<16xf32>
    %8 = vector.multi_reduction <add>, %7, %cst_2 [1] : vector<16x32xf32> to vector<16xf32>
    %9 = vector.shape_cast %8 : vector<16xf32> to vector<16x1xf32>
    %cst_3 = arith.constant 3.200000e+01 : f32
    %10 = vector.broadcast %cst_3 : f32 to vector<16x1xf32>
    %11 = arith.divf %9, %10 : vector<16x1xf32>
    %cst_4 = arith.constant 9.99999974E-6 : f32
    %12 = vector.broadcast %cst_4 : f32 to vector<16x1xf32>
    %13 = arith.addf %11, %12 : vector<16x1xf32>
    %14 = math.rsqrt %13 : vector<16x1xf32>
    %15 = vector.broadcast %14 : vector<16x1xf32> to vector<16x32xf32>
    %16 = arith.mulf %6, %15 : vector<16x32xf32>
    %c0_5 = arith.constant 0 : index
    %c0_6 = arith.constant 0 : index
    %17 = vector.load %arg3[%c0_5, %c0_6] : memref<1x32xf32, #tpu.memory_space<vmem>>, vector<1x32xf32>
    %18 = vector.broadcast %17 : vector<1x32xf32> to vector<16x32xf32>
    %19 = arith.mulf %16, %18 : vector<16x32xf32>
    %c0_7 = arith.constant 0 : index
    %c0_8 = arith.constant 0 : index
    %20 = vector.load %arg4[%c0_7, %c0_8] : memref<1x32xf32, #tpu.memory_space<vmem>>, vector<1x32xf32>
    %21 = vector.broadcast %20 : vector<1x32xf32> to vector<16x32xf32>
    %22 = arith.addf %19, %21 : vector<16x32xf32>
    %23 = arith.truncf %22 : vector<16x32xf32> to vector<16x32xbf16>
    %c0_9 = arith.constant 0 : index
    %c0_10 = arith.constant 0 : index
    %24 = vector.load %arg5[%c0_9, %c0_10] : memref<32x128xbf16, #tpu.memory_space<vmem>>, vector<32x128xbf16>
    %cst_11 = arith.constant dense<0.000000e+00> : vector<16x128xf32>
    %25 = tpu.matmul %23, %24, %cst_11 {dimension_numbers = #tpu.dot_dimension_numbers<[1], [0], [0], [1], [0, 0, 1, 1], [], []>} : vector<16x32xbf16>, vector<32x128xbf16>, vector<16x128xf32> -> vector<16x128xf32>
    %c0_12 = arith.constant 0 : index
    %c0_13 = arith.constant 0 : index
    %26 = vector.load %arg6[%c0_12, %c0_13] : memref<1x128xf32, #tpu.memory_space<vmem>>, vector<1x128xf32>
    %27 = vector.broadcast %26 : vector<1x128xf32> to vector<16x128xf32>
    %28 = arith.addf %25, %27 : vector<16x128xf32>
    %cst_14 = arith.constant 0.000000e+00 : f32
    %29 = vector.broadcast %cst_14 : f32 to vector<16x128xf32>
    %30 = arith.maximumf %28, %29 : vector<16x128xf32>
    %31 = arith.truncf %30 : vector<16x128xf32> to vector<16x128xbf16>
    %c0_15 = arith.constant 0 : index
    %c0_16 = arith.constant 0 : index
    %32 = vector.load %arg7[%c0_15, %c0_16] : memref<128x32xbf16, #tpu.memory_space<vmem>>, vector<128x32xbf16>
    %cst_17 = arith.constant dense<0.000000e+00> : vector<16x32xf32>
    %33 = tpu.matmul %31, %32, %cst_17 {dimension_numbers = #tpu.dot_dimension_numbers<[1], [0], [0], [1], [0, 0, 1, 1], [], []>} : vector<16x128xbf16>, vector<128x32xbf16>, vector<16x32xf32> -> vector<16x32xf32>
    %c0_18 = arith.constant 0 : index
    %c0_19 = arith.constant 0 : index
    %34 = vector.load %arg8[%c0_18, %c0_19] : memref<1x32xf32, #tpu.memory_space<vmem>>, vector<1x32xf32>
    %35 = vector.broadcast %34 : vector<1x32xf32> to vector<16x32xf32>
    %36 = arith.addf %33, %35 : vector<16x32xf32>
    %c0_20 = arith.constant 0 : index
    %c0_21 = arith.constant 0 : index
    %37 = vector.load %arg2[%c0_20, %c0_21] : memref<16x32xf32, #tpu.memory_space<vmem>>, vector<16x32xf32>
    %38 = arith.addf %36, %37 : vector<16x32xf32>
    %c0_22 = arith.constant 0 : index
    %c0_23 = arith.constant 0 : index
    %39 = vector.load %arg9[%c0_22, %c0_23] : memref<16x32xf32, #tpu.memory_space<vmem>>, vector<16x32xf32>
    tpu.vector_store %arg9[%c0_22, %c0_23], %38 {strides = array<i32>} : memref<16x32xf32, #tpu.memory_space<vmem>>, vector<16x32xf32>,
    %40 = arith.truncf %30 : vector<16x128xf32> to vector<16x128xbf16>
    %c0_24 = arith.constant 0 : index
    %c0_25 = arith.constant 0 : index
    %41 = vector.load %arg10[%c0_24, %c0_25] : memref<16x128xbf16, #tpu.memory_space<vmem>>, vector<16x128xbf16>
    tpu.vector_store %arg10[%c0_24, %c0_25], %40 {strides = array<i32>} : memref<16x128xbf16, #tpu.memory_space<vmem>>, vector<16x128xbf16>,
    %42 = arith.truncf %36 : vector<16x32xf32> to vector<16x32xbf16>
    %c0_26 = arith.constant 0 : index
    %c0_27 = arith.constant 0 : index
    %43 = vector.load %arg11[%c0_26, %c0_27] : memref<16x32xbf16, #tpu.memory_space<vmem>>, vector<16x32xbf16>
    tpu.vector_store %arg11[%c0_26, %c0_27], %42 {strides = array<i32>} : memref<16x32xbf16, #tpu.memory_space<vmem>>, vector<16x32xbf16>,
    return
  }
  func.func @transform_0(%arg0: i32) -> (i32, i32) {
    %c0_i32 = arith.constant 0 : i32
    %c0_i32_0 = arith.constant 0 : i32
    return %arg0, %c0_i32 : i32, i32
  }
  func.func @transform_1(%arg0: i32) -> (i32, i32) {
    %c0_i32 = arith.constant 0 : i32
    %c0_i32_0 = arith.constant 0 : i32
    return %arg0, %c0_i32 : i32, i32
  }
  func.func @transform_2(%arg0: i32) -> (i32, i32) {
    %c0_i32 = arith.constant 0 : i32
    %c0_i32_0 = arith.constant 0 : i32
    %c0_i32_1 = arith.constant 0 : i32
    return %c0_i32, %c0_i32_0 : i32, i32
  }
  func.func @transform_3(%arg0: i32) -> (i32, i32) {
    %c0_i32 = arith.constant 0 : i32
    %c0_i32_0 = arith.constant 0 : i32
    %c0_i32_1 = arith.constant 0 : i32
    return %c0_i32, %c0_i32_0 : i32, i32
  }
  func.func @transform_4(%arg0: i32) -> (i32, i32) {
    %c0_i32 = arith.constant 0 : i32
    %c0_i32_0 = arith.constant 0 : i32
    %c0_i32_1 = arith.constant 0 : i32
    return %c0_i32, %c0_i32_0 : i32, i32
  }
  func.func @transform_5(%arg0: i32) -> (i32, i32) {
    %c0_i32 = arith.constant 0 : i32
    %c0_i32_0 = arith.constant 0 : i32
    %c0_i32_1 = arith.constant 0 : i32
    return %c0_i32, %c0_i32_0 : i32, i32
  }
  func.func @transform_6(%arg0: i32) -> (i32, i32) {
    %c0_i32 = arith.constant 0 : i32
    %c0_i32_0 = arith.constant 0 : i32
    %c0_i32_1 = arith.constant 0 : i32
    return %c0_i32, %c0_i32_0 : i32, i32
  }
  func.func @transform_7(%arg0: i32) -> (i32, i32) {
    %c0_i32 = arith.constant 0 : i32
    %c0_i32_0 = arith.constant 0 : i32
    %c0_i32_1 = arith.constant 0 : i32
    return %c0_i32, %c0_i32_0 : i32, i32
  }
  func.func @transform_8(%arg0: i32) -> (i32, i32) {
    %c0_i32 = arith.constant 0 : i32
    %c0_i32_0 = arith.constant 0 : i32
    return %arg0, %c0_i32 : i32, i32
  }
  func.func @transform_9(%arg0: i32) -> (i32, i32) {
    %c0_i32 = arith.constant 0 : i32
    %c0_i32_0 = arith.constant 0 : i32
    return %arg0, %c0_i32 : i32, i32
  }
  func.func @transform_10(%arg0: i32) -> (i32, i32) {
    %c0_i32 = arith.constant 0 : i32
    %c0_i32_0 = arith.constant 0 : i32
    return %arg0, %c0_i32 : i32, i32
  }
}

module attributes {stable_mosaic.version = 11 : i64} {
  func.func @kernel(%arg0: i32, %arg1: memref<16x32xf32, #tpu.memory_space<vmem>>, %arg2: memref<16x32xf32, #tpu.memory_space<vmem>>, %arg3: memref<1x32xf32, #tpu.memory_space<vmem>>, %arg4: memref<1x32xf32, #tpu.memory_space<vmem>>, %arg5: memref<32x128xbf16, #tpu.memory_space<vmem>>, %arg6: memref<1x128xf32, #tpu.memory_space<vmem>>, %arg7: memref<128x32xbf16, #tpu.memory_space<vmem>>, %arg8: memref<1x32xf32, #tpu.memory_space<vmem>>, %arg9: memref<16x32xf32, #tpu.memory_space<vmem>>, %arg10: memref<16x128xbf16, #tpu.memory_space<vmem>>, %arg11: memref<16x32xbf16, #tpu.memory_space<vmem>>) attributes {dimension_semantics = [#tpu.dimension_semantics<parallel>], iteration_bounds = array<i64: 1>, scalar_prefetch = 0 : i64, scratch_operands = 0 : i64, tpu.core_type = #tpu.core_type<tc>, window_params = [{transform_indices = @transform_0, window_bounds = array<i64: 16, 32>}, {transform_indices = @transform_1, window_bounds = array<i64: 16, 32>}, {pipeline_mode = #tpu.pipeline_mode<synchronous>, transform_indices = @transform_2, window_bounds = array<i64: 1, 32>}, {pipeline_mode = #tpu.pipeline_mode<synchronous>, transform_indices = @transform_3, window_bounds = array<i64: 1, 32>}, {pipeline_mode = #tpu.pipeline_mode<synchronous>, transform_indices = @transform_4, window_bounds = array<i64: 32, 128>}, {pipeline_mode = #tpu.pipeline_mode<synchronous>, transform_indices = @transform_5, window_bounds = array<i64: 1, 128>}, {pipeline_mode = #tpu.pipeline_mode<synchronous>, transform_indices = @transform_6, window_bounds = array<i64: 128, 32>}, {pipeline_mode = #tpu.pipeline_mode<synchronous>, transform_indices = @transform_7, window_bounds = array<i64: 1, 32>}, {transform_indices = @transform_8, window_bounds = array<i64: 16, 32>}, {transform_indices = @transform_9, window_bounds = array<i64: 16, 128>}, {transform_indices = @transform_10, window_bounds = array<i64: 16, 32>}]} {
    %c0 = arith.constant 0 : index
    %c0_0 = arith.constant 0 : index
    %0 = vector.load %arg1[%c0, %c0_0] : memref<16x32xf32, #tpu.memory_space<vmem>>, vector<16x32xf32>
    %cst = arith.constant dense<0.000000e+00> : vector<16xf32>
    %1 = vector.multi_reduction <add>, %0, %cst [1] : vector<16x32xf32> to vector<16xf32>
    %2 = vector.shape_cast %1 : vector<16xf32> to vector<16x1xf32>
    %cst_1 = arith.constant 3.200000e+01 : f32
    %3 = vector.broadcast %cst_1 : f32 to vector<16x1xf32>
    %4 = arith.divf %2, %3 : vector<16x1xf32>
    %5 = vector.broadcast %4 : vector<16x1xf32> to vector<16x32xf32>
    %6 = arith.subf %0, %5 : vector<16x32xf32>
    %7 = arith.mulf %6, %6 : vector<16x32xf32>
    %cst_2 = arith.constant dense<0.000000e+00> : vector<16xf32>
    %8 = vector.multi_reduction <add>, %7, %cst_2 [1] : vector<16x32xf32> to vector<16xf32>
    %9 = vector.shape_cast %8 : vector<16xf32> to vector<16x1xf32>
    %cst_3 = arith.constant 3.200000e+01 : f32
    %10 = vector.broadcast %cst_3 : f32 to vector<16x1xf32>
    %11 = arith.divf %9, %10 : vector<16x1xf32>
    %cst_4 = arith.constant 9.99999974E-6 : f32
    %12 = vector.broadcast %cst_4 : f32 to vector<16x1xf32>
    %13 = arith.addf %11, %12 : vector<16x1xf32>
    %14 = math.rsqrt %13 : vector<16x1xf32>
    %15 = vector.broadcast %14 : vector<16x1xf32> to vector<16x32xf32>
    %16 = arith.mulf %6, %15 : vector<16x32xf32>
    %c0_5 = arith.constant 0 : index
    %c0_6 = arith.constant 0 : index
    %17 = vector.load %arg3[%c0_5, %c0_6] : memref<1x32xf32, #tpu.memory_space<vmem>>, vector<1x32xf32>
    %18 = vector.broadcast %17 : vector<1x32xf32> to vector<16x32xf32>
    %19 = arith.mulf %16, %18 : vector<16x32xf32>
    %c0_7 = arith.constant 0 : index
    %c0_8 = arith.constant 0 : index
    %20 = vector.load %arg4[%c0_7, %c0_8] : memref<1x32xf32, #tpu.memory_space<vmem>>, vector<1x32xf32>
    %21 = vector.broadcast %20 : vector<1x32xf32> to vector<16x32xf32>
    %22 = arith.addf %19, %21 : vector<16x32xf32>
    %23 = arith.truncf %22 : vector<16x32xf32> to vector<16x32xbf16>
    %c0_9 = arith.constant 0 : index
    %c0_10 = arith.constant 0 : index
    %24 = vector.load %arg5[%c0_9, %c0_10] : memref<32x128xbf16, #tpu.memory_space<vmem>>, vector<32x128xbf16>
    %cst_11 = arith.constant dense<0.000000e+00> : vector<16x128xf32>
    %25 = tpu.matmul %23, %24, %cst_11 {dimension_numbers = #tpu.dot_dimension_numbers<[1], [0], [0], [1], [0, 0, 1, 1], [], []>} : vector<16x32xbf16>, vector<32x128xbf16>, vector<16x128xf32> -> vector<16x128xf32>
    %c0_12 = arith.constant 0 : index
    %c0_13 = arith.constant 0 : index
    %26 = vector.load %arg6[%c0_12, %c0_13] : memref<1x128xf32, #tpu.memory_space<vmem>>, vector<1x128xf32>
    %27 = vector.broadcast %26 : vector<1x128xf32> to vector<16x128xf32>
    %28 = arith.addf %25, %27 : vector<16x128xf32>
    %cst_14 = arith.constant 0.000000e+00 : f32
    %29 = vector.broadcast %cst_14 : f32 to vector<16x128xf32>
    %30 = arith.maximumf %28, %29 : vector<16x128xf32>
    %31 = arith.truncf %30 : vector<16x128xf32> to vector<16x128xbf16>
    %c0_15 = arith.constant 0 : index
    %c0_16 = arith.constant 0 : index
    %32 = vector.load %arg7[%c0_15, %c0_16] : memref<128x32xbf16, #tpu.memory_space<vmem>>, vector<128x32xbf16>
    %cst_17 = arith.constant dense<0.000000e+00> : vector<16x32xf32>
    %33 = tpu.matmul %31, %32, %cst_17 {dimension_numbers = #tpu.dot_dimension_numbers<[1], [0], [0], [1], [0, 0, 1, 1], [], []>} : vector<16x128xbf16>, vector<128x32xbf16>, vector<16x32xf32> -> vector<16x32xf32>
    %c0_18 = arith.constant 0 : index
    %c0_19 = arith.constant 0 : index
    %34 = vector.load %arg8[%c0_18, %c0_19] : memref<1x32xf32, #tpu.memory_space<vmem>>, vector<1x32xf32>
    %35 = vector.broadcast %34 : vector<1x32xf32> to vector<16x32xf32>
    %36 = arith.addf %33, %35 : vector<16x32xf32>
    %c0_20 = arith.constant 0 : index
    %c0_21 = arith.constant 0 : index
    %37 = vector.load %arg2[%c0_20, %c0_21] : memref<16x32xf32, #tpu.memory_space<vmem>>, vector<16x32xf32>
    %38 = arith.addf %36, %37 : vector<16x32xf32>
    %c0_22 = arith.constant 0 : index
    %c0_23 = arith.constant 0 : index
    %39 = vector.load %arg9[%c0_22, %c0_23] : memref<16x32xf32, #tpu.memory_space<vmem>>, vector<16x32xf32>
    tpu.vector_store %arg9[%c0_22, %c0_23], %38 {strides = array<i32>} : memref<16x32xf32, #tpu.memory_space<vmem>>, vector<16x32xf32>,
    %40 = arith.truncf %30 : vector<16x128xf32> to vector<16x128xbf16>
    %c0_24 = arith.constant 0 : index
    %c0_25 = arith.constant 0 : index
    %41 = vector.load %arg10[%c0_24, %c0_25] : memref<16x128xbf16, #tpu.memory_space<vmem>>, vector<16x128xbf16>
    tpu.vector_store %arg10[%c0_24, %c0_25], %40 {strides = array<i32>} : memref<16x128xbf16, #tpu.memory_space<vmem>>, vector<16x128xbf16>,
    %42 = arith.truncf %36 : vector<16x32xf32> to vector<16x32xbf16>
    %c0_26 = arith.constant 0 : index
    %c0_27 = arith.constant 0 : index
    %43 = vector.load %arg11[%c0_26, %c0_27] : memref<16x32xbf16, #tpu.memory_space<vmem>>, vector<16x32xbf16>
    tpu.vector_store %arg11[%c0_26, %c0_27], %42 {strides = array<i32>} : memref<16x32xbf16, #tpu.memory_space<vmem>>, vector<16x32xbf16>,
    return
  }
  func.func @transform_0(%arg0: i32) -> (i32, i32) {
    %c0_i32 = arith.constant 0 : i32
    %c0_i32_0 = arith.constant 0 : i32
    return %arg0, %c0_i32 : i32, i32
  }
  func.func @transform_1(%arg0: i32) -> (i32, i32) {
    %c0_i32 = arith.constant 0 : i32
    %c0_i32_0 = arith.constant 0 : i32
    return %arg0, %c0_i32 : i32, i32
  }
  func.func @transform_2(%arg0: i32) -> (i32, i32) {
    %c0_i32 = arith.constant 0 : i32
    %c0_i32_0 = arith.constant 0 : i32
    %c0_i32_1 = arith.constant 0 : i32
    return %c0_i32, %c0_i32_0 : i32, i32
  }
  func.func @transform_3(%arg0: i32) -> (i32, i32) {
    %c0_i32 = arith.constant 0 : i32
    %c0_i32_0 = arith.constant 0 : i32
    %c0_i32_1 = arith.constant 0 : i32
    return %c0_i32, %c0_i32_0 : i32, i32
  }
  func.func @transform_4(%arg0: i32) -> (i32, i32) {
    %c0_i32 = arith.constant 0 : i32
    %c0_i32_0 = arith.constant 0 : i32
    %c0_i32_1 = arith.constant 0 : i32
    return %c0_i32, %c0_i32_0 : i32, i32
  }
  func.func @transform_5(%arg0: i32) -> (i32, i32) {
    %c0_i32 = arith.constant 0 : i32
    %c0_i32_0 = arith.constant 0 : i32
    %c0_i32_1 = arith.constant 0 : i32
    return %c0_i32, %c0_i32_0 : i32, i32
  }
  func.func @transform_6(%arg0: i32) -> (i32, i32) {
    %c0_i32 = arith.constant 0 : i32
    %c0_i32_0 = arith.constant 0 : i32
    %c0_i32_1 = arith.constant 0 : i32
    return %c0_i32, %c0_i32_0 : i32, i32
  }
  func.func @transform_7(%arg0: i32) -> (i32, i32) {
    %c0_i32 = arith.constant 0 : i32
    %c0_i32_0 = arith.constant 0 : i32
    %c0_i32_1 = arith.constant 0 : i32
    return %c0_i32, %c0_i32_0 : i32, i32
  }
  func.func @transform_8(%arg0: i32) -> (i32, i32) {
    %c0_i32 = arith.constant 0 : i32
    %c0_i32_0 = arith.constant 0 : i32
    return %arg0, %c0_i32 : i32, i32
  }
  func.func @transform_9(%arg0: i32) -> (i32, i32) {
    %c0_i32 = arith.constant 0 : i32
    %c0_i32_0 = arith.constant 0 : i32
    return %arg0, %c0_i32 : i32, i32
  }
  func.func @transform_10(%arg0: i32) -> (i32, i32) {
    %c0_i32 = arith.constant 0 : i32
    %c0_i32_0 = arith.constant 0 : i32
    return %arg0, %c0_i32 : i32, i32
  }
}

</mosaic_0001>

<llo_original>
// kernel: tpu_custom_call.1
$region0: #{tpu_custom_call.1}
  #allocation0 [shape = 'u32[]', space=smem, size = 0x4, offset = 0x4, fixed_abs, tag = 'smem constant byte address 0x4 - core index']
  #allocation1 [shape = 'u32[72,128]{1,0:T(1,128)}', space=vmem, size = 0x9000, scoped, tag = 'internal scratch']
  %s0 = inlined_call_operand.vmem [shape: f32[16,32], index: 0, kind: input, shape index: {}]
  %s1 = inlined_call_operand.hbm [shape: f32[16,32], index: 1, kind: input, shape index: {}, may-alias: {1,8}]
  %s2 = inlined_call_operand.vmem [shape: f32[1,32], index: 2, kind: input, shape index: {}]
  %s3 = inlined_call_operand.vmem [shape: f32[1,32], index: 3, kind: input, shape index: {}]
  %s4 = inlined_call_operand.vmem [shape: bf16[32,128], index: 4, kind: input, shape index: {}]
  %s5 = inlined_call_operand.vmem [shape: f32[1,128], index: 5, kind: input, shape index: {}]
  %s6 = inlined_call_operand.vmem [shape: bf16[128,32], index: 6, kind: input, shape index: {}]
  %s7 = inlined_call_operand.vmem [shape: f32[1,32], index: 7, kind: input, shape index: {}]
  %s8 = inlined_call_operand.hbm [shape: f32[16,32], index: 8, kind: output, shape index: {0}, may-alias: {1,8}]
  %s9 = inlined_call_operand.hbm [shape: bf16[16,128], index: 9, kind: output, shape index: {1}]
  %s10 = inlined_call_operand.hbm [shape: bf16[16,32], index: 10, kind: output, shape index: {2}]
  %11 = xla_tuple %s8, %s9, %s10
  %s12 = sld [smem:[#allocation0]]
  $region62: #{tpu_custom_call.1} parent=0
    _
  %s14 = ssub.s32 1, %s12
  %s15 = scalar_select 0, %s14, %s12
  $region1: #{tpu_custom_call.1} parent=0
    #allocation2 [shape = 'u8[8192]{0}', space=vmem, size = 0x2000, scoped, tag = 'input window, operand 1, single buffered']
    #allocation3 [shape = 's32[1]{0}', space=sflag, size = 0x4, scoped, tag = 'scoped memory for tpu_custom_call.1']
    #allocation4 [shape = 's32[1]{0}', space=sflag, size = 0x4, scoped, tag = 'scoped memory for tpu_custom_call.1']
    #allocation5 [shape = 'u8[8192]{0}', space=vmem, size = 0x2000, scoped, tag = 'output window, operand 0, single buffered']
    #allocation6 [shape = 'u8[4096]{0}', space=vmem, size = 0x1000, scoped, tag = 'output window, operand 1, single buffered']
    #allocation7 [shape = 's32[1]{0}', space=sflag, size = 0x4, scoped, tag = 'scoped memory for tpu_custom_call.1']
    #allocation8 [shape = 'u8[4096]{0}', space=vmem, size = 0x1000, scoped, tag = 'output window, operand 2, single buffered']
    %16 = vsyncpa [#allocation3], 0
    %17 = vsyncpa [#allocation4], 0
    %18 = vsyncpa [#allocation7], 0
    // Predicated region
    $region2: #{tpu_custom_call.1} parent=1 // pred_check
      _
    $region3: #{tpu_custom_call.1} parent=1 // pred_check_branch
      %20 = sbr.rel (0) target = $region5
    $region4: #{tpu_custom_call.1} parent=1 // pred_region
      _
    $region5: #{tpu_custom_call.1} parent=1 // pred_fallthru
      _
    // Predicated region
    $region6: #{tpu_custom_call.1} parent=1 // pred_check
      _
    $region7: #{tpu_custom_call.1} parent=1 // pred_check_branch
      %22 = sbr.rel (0) target = $region9
    $region8: #{tpu_custom_call.1} parent=1 // pred_region
      %24 = vsyncadd [#allocation3], 0
      %s25 = sshll.u32 %s1, 4
      %s26 = int_to_ptr.hbm [resolvable:$true] %s25
      %s27 = sshll.u32 [#allocation2], 4
      %s28 = int_to_ptr.vmem [resolvable:$true] %s27
      %33 = dma.hbm_to_vmem [thread:$0]  %s26, 256, %s28, [#allocation3], 128, 128, 8
    $region9: #{tpu_custom_call.1} parent=1 // pred_fallthru
      _
    // Predicated region
    $region10: #{tpu_custom_call.1} parent=1 // pred_check
      _
    $region11: #{tpu_custom_call.1} parent=1 // pred_check_branch
      %35 = sbr.rel (0) target = $region13
    $region12: #{tpu_custom_call.1} parent=1 // pred_region
      _
    $region13: #{tpu_custom_call.1} parent=1 // pred_fallthru
      _
    // Predicated region
    $region14: #{tpu_custom_call.1} parent=1 // pred_check
      _
    $region15: #{tpu_custom_call.1} parent=1 // pred_check_branch
      %37 = sbr.rel (0) target = $region17
    $region16: #{tpu_custom_call.1} parent=1 // pred_region
      _
    $region17: #{tpu_custom_call.1} parent=1 // pred_fallthru
      _
    // Predicated region
    $region18: #{tpu_custom_call.1} parent=1 // pred_check
      _
    $region19: #{tpu_custom_call.1} parent=1 // pred_check_branch
      %39 = sbr.rel (0) target = $region21
    $region20: #{tpu_custom_call.1} parent=1 // pred_region
      _
    $region21: #{tpu_custom_call.1} parent=1 // pred_fallthru
      _
    // Predicated region
    $region22: #{tpu_custom_call.1} parent=1 // pred_check
      _
    $region23: #{tpu_custom_call.1} parent=1 // pred_check_branch
      %41 = sbr.rel (0) target = $region25
    $region24: #{tpu_custom_call.1} parent=1 // pred_region
      _
    $region25: #{tpu_custom_call.1} parent=1 // pred_fallthru
      _
    // Predicated region
    $region26: #{tpu_custom_call.1} parent=1 // pred_check
      _
    $region27: #{tpu_custom_call.1} parent=1 // pred_check_branch
      %43 = sbr.rel (0) target = $region29
    $region28: #{tpu_custom_call.1} parent=1 // pred_region
      _
    $region29: #{tpu_custom_call.1} parent=1 // pred_fallthru
      _
    // Predicated region
    $region30: #{tpu_custom_call.1} parent=1 // pred_check
      _
    $region31: #{tpu_custom_call.1} parent=1 // pred_check_branch
      %45 = sbr.rel (0) target = $region33
    $region32: #{tpu_custom_call.1} parent=1 // pred_region
      _
    $region33: #{tpu_custom_call.1} parent=1 // pred_fallthru
      _
    // Predicated region
    $region34: #{tpu_custom_call.1} parent=1 // pred_check
      _
    $region35: #{tpu_custom_call.1} parent=1 // pred_check_branch
      %47 = sbr.rel (0) target = $region37
    $region36: #{tpu_custom_call.1} parent=1 // pred_region
      %49 = dma.done [#allocation3], 256
    $region37: #{tpu_custom_call.1} parent=1 // pred_fallthru
      _
    %v51 = vld [vmem:[%s0] sm:$0xff]
    %v52 = vld [vmem:[%s0 + $0x8] sm:$0xff]
    %vm53 = vcmask 261120
    %v54 = vsel %vm53, %v51, 0.0
    %55 = vadd.xlane.f32.xlu0 %v54
    %v56 = vpop.xlane.xlu0 %55
    %v57 = vsel %vm53, %v52, 0.0
    %58 = vadd.xlane.f32.xlu0 %v57
    %v59 = vpop.xlane.xlu0 %58
    %v60 = vrcp.pop 32.0
    %v61 = vmul.f32 32.0, %v60
    %v62 = vsub.f32 1.0, %v61
    %v63 = vmul.f32 %v60, %v62
    %v64 = vadd.f32 %v60, %v63
    %vm65 = vweird.f32 %v60
    %v66 = vsel %vm65, %v60, %v64
    %v67 = vmul.f32 %v56, %v66
    %v68 = vmul.f32 %v59, %v66
    %v69 = vsub.f32 %v51, %v67
    %v70 = vsub.f32 %v52, %v68
    %v71 = vmul.f32 %v69, %v69
    %v72 = vmul.f32 %v70, %v70
    %v73 = vsel %vm53, %v71, 0.0
    %74 = vadd.xlane.f32.xlu0 %v73
    %v75 = vpop.xlane.xlu0 %74
    %v76 = vsel %vm53, %v72, 0.0
    %77 = vadd.xlane.f32.xlu0 %v76
    %v78 = vpop.xlane.xlu0 %77
    %v79 = vmul.f32 %v75, %v66
    %v80 = vmul.f32 %v78, %v66
    %v81 = vadd.f32 %v79, 1e-05
    %v82 = vadd.f32 %v80, 1e-05
    %v83 = vrsqrt.pop %v81
    %v84 = vmul.f32 %v83, %v81
    %v85 = vmul.f32 %v84, %v83
    %v86 = vmul.f32 0.5, %v85
    %v87 = vsub.f32 1.5, %v86
    %v88 = vmul.f32 %v83, %v87
    %vm89 = vweird.f32 %v81
    %vm90 = vweird.f32 %v83
    %vm91 = vmor %vm89, %vm90
    %v92 = vsel %vm91, %v83, %v88
    %v93 = vrsqrt.pop %v82
    %v94 = vmul.f32 %v93, %v82
    %v95 = vmul.f32 %v94, %v93
    %v96 = vmul.f32 0.5, %v95
    %v97 = vsub.f32 1.5, %v96
    %v98 = vmul.f32 %v93, %v97
    %vm99 = vweird.f32 %v82
    %vm100 = vweird.f32 %v93
    %vm101 = vmor %vm99, %vm100
    %v102 = vsel %vm101, %v93, %v98
    %v103 = vmul.f32 %v69, %v92
    %v104 = vmul.f32 %v70, %v102
    %v105 = vld [vmem:[%s2] sm:$0x1]
    %v107 = vperm.slane %v105, 0
    %v109 = vmul.f32 %v103, %v107
    %v110 = vmul.f32 %v104, %v107
    %v111 = vld [vmem:[%s3] sm:$0x1]
    %v113 = vperm.slane %v111, 0
    %v115 = vadd.f32 %v109, %v113
    %v116 = vadd.f32 %v110, %v113
    %v117 = vpack.c.bf16 %v116, %v115
    %v118 = vld [vmem:[%s4] sm:$0xf]
    %v119 = vld [vmem:[%s4 + $0x4] sm:$0xf]
    %v120 = vld [vmem:[%s4 + $0x8] sm:$0xf]
    %v121 = vld [vmem:[%s4 + $0xc] sm:$0xf]
    %v122 = vld [vmem:[%s5] sm:$0x1]
    %v124 = vperm.slane %v122, 0
    %v130 = vunpack.c.l.b16 %v118
    %v131 = vunpack.c.l.b16 %v119
    %v132 = vunpack.c.l.b16 %v120
    %v133 = vunpack.c.l.b16 %v121
    %v134 = vpack.c.b16 %v131, %v130
    %v135 = vpack.c.b16 %v133, %v132
    %v139 = vsel %vm53, %v117, 0
    %141 = vmatpush.bf16.msra.mxu0 0
    %142 = vmatpush.bf16.msra.mxu0 0
    %143 = vmatpush.bf16.msra.mxu0 0
    %144 = vmatpush.bf16.msra.mxu0 0
    %145 = vmatpush.bf16.msra.mxu0 0
    %146 = vmatpush.bf16.msra.mxu0 0
    %147 = vmatpush.bf16.msra.mxu0 %v135
    %148 = vmatpush.bf16.msra.mxu0 %v134
    %149 = vmatmul.bf16.gmra.mxu0 %v139
    %v150 = vpop.f32.mrf.mxu0
    %v151 = vadd.f32 %v124, %v150
    %v152 = vpop.f32.mrf.mxu0
    %v153 = vadd.f32 %v124, %v152
    %154 = vdwg.mxu0
    %v155 = vmax.f32 %v151, 0.0
    %v156 = vmax.f32 %v153, 0.0
    %v157 = vpack.c.bf16 %v155, %v155
    %v158 = vpack.c.bf16 %v156, %v156
    %v159 = vld [vmem:[%s6] sm:$0xf]
    %v160 = vld [vmem:[%s6 + $0x4] sm:$0xf]
    %v161 = vld [vmem:[%s6 + $0x8] sm:$0xf]
    %v162 = vld [vmem:[%s6 + $0xc] sm:$0xf]
    %v163 = vld [vmem:[%s6 + $0x10] sm:$0xf]
    %v164 = vld [vmem:[%s6 + $0x14] sm:$0xf]
    %v165 = vld [vmem:[%s6 + $0x18] sm:$0xf]
    %v166 = vld [vmem:[%s6 + $0x1c] sm:$0xf]
    %v167 = vld [vmem:[%s6 + $0x20] sm:$0xf]
    %v168 = vld [vmem:[%s6 + $0x24] sm:$0xf]
    %v169 = vld [vmem:[%s6 + $0x28] sm:$0xf]
    %v170 = vld [vmem:[%s6 + $0x2c] sm:$0xf]
    %v171 = vld [vmem:[%s6 + $0x30] sm:$0xf]
    %v172 = vld [vmem:[%s6 + $0x34] sm:$0xf]
    %v173 = vld [vmem:[%s6 + $0x38] sm:$0xf]
    %v174 = vld [vmem:[%s6 + $0x3c] sm:$0xf]
    %v175 = vld [vmem:[%s7] sm:$0x1]
    %v177 = vperm.slane %v175, 0
    %v181 = vunpack.c.l.b16 %v157
    %v182 = vunpack.c.l.b16 %v158
    %v183 = vpack.c.b16 %v182, %v181
    %v201 = vunpack.c.l.b16 %v159
    %v202 = vunpack.c.l.b16 %v160
    %v203 = vunpack.c.l.b16 %v161
    %v204 = vunpack.c.l.b16 %v162
    %v205 = vunpack.c.l.b16 %v163
    %v206 = vunpack.c.l.b16 %v164
    %v207 = vunpack.c.l.b16 %v165
    %v208 = vunpack.c.l.b16 %v166
    %v209 = vunpack.c.l.b16 %v167
    %v210 = vunpack.c.l.b16 %v168
    %v211 = vunpack.c.l.b16 %v169
    %v212 = vunpack.c.l.b16 %v170
    %v213 = vunpack.c.l.b16 %v171
    %v214 = vunpack.c.l.b16 %v172
    %v215 = vunpack.c.l.b16 %v173
    %v216 = vunpack.c.l.b16 %v174
    %v217 = vpack.c.b16 %v202, %v201
    %v218 = vpack.c.b16 %v204, %v203
    %v219 = vpack.c.b16 %v206, %v205
    %v220 = vpack.c.b16 %v208, %v207
    %v221 = vpack.c.b16 %v210, %v209
    %v222 = vpack.c.b16 %v212, %v211
    %v223 = vpack.c.b16 %v214, %v213
    %v224 = vpack.c.b16 %v216, %v215
    %233 = vmatpush.bf16.msra.mxu0 %v224
    %234 = vmatpush.bf16.msra.mxu0 %v223
    %235 = vmatpush.bf16.msra.mxu0 %v222
    %236 = vmatpush.bf16.msra.mxu0 %v221
    %237 = vmatpush.bf16.msra.mxu0 %v220
    %238 = vmatpush.bf16.msra.mxu0 %v219
    %239 = vmatpush.bf16.msra.mxu0 %v218
    %240 = vmatpush.bf16.msra.mxu0 %v217
    %241 = vmatmul.bf16.gmra.mxu0 %v183
    %v242 = vpop.f32.mrf.mxu0
    %v243 = vadd.f32 %v177, %v242
    %v244 = vpop.f32.mrf.mxu0
    %v245 = vadd.f32 %v177, %v244
    %246 = vdwg.mxu0
    %v247 = vld [vmem:[#allocation2] sm:$0xff]
    %v248 = vld [vmem:[#allocation2 + $0x8] sm:$0xff]
    %v249 = vadd.f32 %v243, %v247
    %v250 = vadd.f32 %v245, %v248
    %251 = vst.msk [vmem:[#allocation5] sm:$0xff] %vm53, %v249
    %252 = vst.msk [vmem:[#allocation5 + $0x8] sm:$0xff] %vm53, %v250
    %253 = vst [vmem:[#allocation6] sm:$0xf] %v157
    %254 = vst [vmem:[#allocation6 + $0x4] sm:$0xf] %v158
    %v255 = vpack.c.bf16 %v243, %v243
    %v256 = vpack.c.bf16 %v245, %v245
    %vm257 = vcmask 257024
    %258 = vst.msk [vmem:[#allocation8] sm:$0xf] %vm257, %v255
    %259 = vst.msk [vmem:[#allocation8 + $0x4] sm:$0xf] %vm257, %v256
    // Predicated region
    $region38: #{tpu_custom_call.1} parent=1 // pred_check
      _
    $region39: #{tpu_custom_call.1} parent=1 // pred_check_branch
      %261 = sbr.rel (0) target = $region41
    $region40: #{tpu_custom_call.1} parent=1 // pred_region
      %263 = vsyncadd [#allocation4], 0
      %s264 = sshll.u32 [#allocation5], 4
      %s265 = int_to_ptr.vmem [resolvable:$true] %s264
      %s266 = sshll.u32 %s8, 4
      %s267 = int_to_ptr.hbm [resolvable:$true] %s266
      %272 = dma.vmem_to_hbm [thread:$0]  %s265, 256, %s267, [#allocation4], 128, 128, 8
    $region41: #{tpu_custom_call.1} parent=1 // pred_fallthru
      _
    // Predicated region
    $region42: #{tpu_custom_call.1} parent=1 // pred_check
      _
    $region43: #{tpu_custom_call.1} parent=1 // pred_check_branch
      %274 = sbr.rel (0) target = $region45
    $region44: #{tpu_custom_call.1} parent=1 // pred_region
      %276 = vsyncadd [#allocation7], 0
      %s277 = sshll.u32 [#allocation6], 4
      %s278 = int_to_ptr.vmem [resolvable:$true] %s277
      %s279 = sshll.u32 %s9, 4
      %s280 = int_to_ptr.hbm [resolvable:$true] %s279
      %285 = dma.vmem_to_hbm [thread:$0]  %s278, 128, %s280, [#allocation7], 64, 64, 4
    $region45: #{tpu_custom_call.1} parent=1 // pred_fallthru
      _
    // Predicated region
    $region46: #{tpu_custom_call.1} parent=1 // pred_check
      _
    $region47: #{tpu_custom_call.1} parent=1 // pred_check_branch
      %287 = sbr.rel (0) target = $region49
    $region48: #{tpu_custom_call.1} parent=1 // pred_region
      %289 = vsyncadd [#allocation7], 0
      %s290 = sshll.u32 [#allocation8], 4
      %s291 = int_to_ptr.vmem [resolvable:$true] %s290
      %s292 = sshll.u32 %s10, 4
      %s293 = int_to_ptr.hbm [resolvable:$true] %s292
      %298 = dma.vmem_to_hbm [thread:$0]  %s291, 128, %s293, [#allocation7], 64, 64, 4
    $region49: #{tpu_custom_call.1} parent=1 // pred_fallthru
      _
    // Predicated region
    $region50: #{tpu_custom_call.1} parent=1 // pred_check
      _
    $region51: #{tpu_custom_call.1} parent=1 // pred_check_branch
      %300 = sbr.rel (0) target = $region53
    $region52: #{tpu_custom_call.1} parent=1 // pred_region
      %302 = dma.done [#allocation4], 256
    $region53: #{tpu_custom_call.1} parent=1 // pred_fallthru
      _
    // Predicated region
    $region54: #{tpu_custom_call.1} parent=1 // pred_check
      _
    $region55: #{tpu_custom_call.1} parent=1 // pred_check_branch
      %304 = sbr.rel (0) target = $region57
    $region56: #{tpu_custom_call.1} parent=1 // pred_region
      %306 = dma.done [#allocation7], 128
    $region57: #{tpu_custom_call.1} parent=1 // pred_fallthru
      _
    // Predicated region
    $region58: #{tpu_custom_call.1} parent=1 // pred_check
      _
    $region59: #{tpu_custom_call.1} parent=1 // pred_check_branch
      %308 = sbr.rel (0) target = $region61
    $region60: #{tpu_custom_call.1} parent=1 // pred_region
      %310 = dma.done [#allocation7], 128
    $region61: #{tpu_custom_call.1} parent=1 // pred_fallthru
      _
    %311 = vsyncpa [#allocation3], 1
    %312 = vsyncpa [#allocation4], 1
    %313 = vsyncpa [#allocation7], 1

// kernel: tpu_custom_call.1
$region0: #{tpu_custom_call.1}
  #allocation0 [shape = 'u32[]', space=smem, size = 0x4, offset = 0x4, fixed_abs, tag = 'smem constant byte address 0x4 - core index']
  #allocation1 [shape = 'u32[72,128]{1,0:T(1,128)}', space=vmem, size = 0x9000, scoped, tag = 'internal scratch']
  %s0 = inlined_call_operand.vmem [shape: f32[16,32], index: 0, kind: input, shape index: {}]
  %s1 = inlined_call_operand.hbm [shape: f32[16,32], index: 1, kind: input, shape index: {}, may-alias: {1,8}]
  %s2 = inlined_call_operand.vmem [shape: f32[1,32], index: 2, kind: input, shape index: {}]
  %s3 = inlined_call_operand.vmem [shape: f32[1,32], index: 3, kind: input, shape index: {}]
  %s4 = inlined_call_operand.vmem [shape: bf16[32,128], index: 4, kind: input, shape index: {}]
  %s5 = inlined_call_operand.vmem [shape: f32[1,128], index: 5, kind: input, shape index: {}]
  %s6 = inlined_call_operand.vmem [shape: bf16[128,32], index: 6, kind: input, shape index: {}]
  %s7 = inlined_call_operand.vmem [shape: f32[1,32], index: 7, kind: input, shape index: {}]
  %s8 = inlined_call_operand.hbm [shape: f32[16,32], index: 8, kind: output, shape index: {0}, may-alias: {1,8}]
  %s9 = inlined_call_operand.hbm [shape: bf16[16,128], index: 9, kind: output, shape index: {1}]
  %s10 = inlined_call_operand.hbm [shape: bf16[16,32], index: 10, kind: output, shape index: {2}]
  %11 = xla_tuple %s8, %s9, %s10
  %s12 = sld [smem:[#allocation0]]
  $region62: #{tpu_custom_call.1} parent=0
    _
  %s14 = ssub.s32 1, %s12
  %s15 = scalar_select 0, %s14, %s12
  $region1: #{tpu_custom_call.1} parent=0
    #allocation2 [shape = 'u8[8192]{0}', space=vmem, size = 0x2000, scoped, tag = 'input window, operand 1, single buffered']
    #allocation3 [shape = 's32[1]{0}', space=sflag, size = 0x4, scoped, tag = 'scoped memory for tpu_custom_call.1']
    #allocation4 [shape = 's32[1]{0}', space=sflag, size = 0x4, scoped, tag = 'scoped memory for tpu_custom_call.1']
    #allocation5 [shape = 'u8[8192]{0}', space=vmem, size = 0x2000, scoped, tag = 'output window, operand 0, single buffered']
    #allocation6 [shape = 'u8[4096]{0}', space=vmem, size = 0x1000, scoped, tag = 'output window, operand 1, single buffered']
    #allocation7 [shape = 's32[1]{0}', space=sflag, size = 0x4, scoped, tag = 'scoped memory for tpu_custom_call.1']
    #allocation8 [shape = 'u8[4096]{0}', space=vmem, size = 0x1000, scoped, tag = 'output window, operand 2, single buffered']
    %16 = vsyncpa [#allocation3], 0
    %17 = vsyncpa [#allocation4], 0
    %18 = vsyncpa [#allocation7], 0
    // Predicated region
    $region2: #{tpu_custom_call.1} parent=1 // pred_check
      _
    $region3: #{tpu_custom_call.1} parent=1 // pred_check_branch
      %20 = sbr.rel (0) target = $region5
    $region4: #{tpu_custom_call.1} parent=1 // pred_region
      _
    $region5: #{tpu_custom_call.1} parent=1 // pred_fallthru
      _
    // Predicated region
    $region6: #{tpu_custom_call.1} parent=1 // pred_check
      _
    $region7: #{tpu_custom_call.1} parent=1 // pred_check_branch
      %22 = sbr.rel (0) target = $region9
    $region8: #{tpu_custom_call.1} parent=1 // pred_region
      %24 = vsyncadd [#allocation3], 0
      %s25 = sshll.u32 %s1, 4
      %s26 = int_to_ptr.hbm [resolvable:$true] %s25
      %s27 = sshll.u32 [#allocation2], 4
      %s28 = int_to_ptr.vmem [resolvable:$true] %s27
      %33 = dma.hbm_to_vmem [thread:$0]  %s26, 256, %s28, [#allocation3], 128, 128, 8
    $region9: #{tpu_custom_call.1} parent=1 // pred_fallthru
      _
    // Predicated region
    $region10: #{tpu_custom_call.1} parent=1 // pred_check
      _
    $region11: #{tpu_custom_call.1} parent=1 // pred_check_branch
      %35 = sbr.rel (0) target = $region13
    $region12: #{tpu_custom_call.1} parent=1 // pred_region
      _
    $region13: #{tpu_custom_call.1} parent=1 // pred_fallthru
      _
    // Predicated region
    $region14: #{tpu_custom_call.1} parent=1 // pred_check
      _
    $region15: #{tpu_custom_call.1} parent=1 // pred_check_branch
      %37 = sbr.rel (0) target = $region17
    $region16: #{tpu_custom_call.1} parent=1 // pred_region
      _
    $region17: #{tpu_custom_call.1} parent=1 // pred_fallthru
      _
    // Predicated region
    $region18: #{tpu_custom_call.1} parent=1 // pred_check
      _
    $region19: #{tpu_custom_call.1} parent=1 // pred_check_branch
      %39 = sbr.rel (0) target = $region21
    $region20: #{tpu_custom_call.1} parent=1 // pred_region
      _
    $region21: #{tpu_custom_call.1} parent=1 // pred_fallthru
      _
    // Predicated region
    $region22: #{tpu_custom_call.1} parent=1 // pred_check
      _
    $region23: #{tpu_custom_call.1} parent=1 // pred_check_branch
      %41 = sbr.rel (0) target = $region25
    $region24: #{tpu_custom_call.1} parent=1 // pred_region
      _
    $region25: #{tpu_custom_call.1} parent=1 // pred_fallthru
      _
    // Predicated region
    $region26: #{tpu_custom_call.1} parent=1 // pred_check
      _
    $region27: #{tpu_custom_call.1} parent=1 // pred_check_branch
      %43 = sbr.rel (0) target = $region29
    $region28: #{tpu_custom_call.1} parent=1 // pred_region
      _
    $region29: #{tpu_custom_call.1} parent=1 // pred_fallthru
      _
    // Predicated region
    $region30: #{tpu_custom_call.1} parent=1 // pred_check
      _
    $region31: #{tpu_custom_call.1} parent=1 // pred_check_branch
      %45 = sbr.rel (0) target = $region33
    $region32: #{tpu_custom_call.1} parent=1 // pred_region
      _
    $region33: #{tpu_custom_call.1} parent=1 // pred_fallthru
      _
    // Predicated region
    $region34: #{tpu_custom_call.1} parent=1 // pred_check
      _
    $region35: #{tpu_custom_call.1} parent=1 // pred_check_branch
      %47 = sbr.rel (0) target = $region37
    $region36: #{tpu_custom_call.1} parent=1 // pred_region
      %49 = dma.done [#allocation3], 256
    $region37: #{tpu_custom_call.1} parent=1 // pred_fallthru
      _
    %v51 = vld [vmem:[%s0] sm:$0xff]
    %v52 = vld [vmem:[%s0 + $0x8] sm:$0xff]
    %vm53 = vcmask 261120
    %v54 = vsel %vm53, %v51, 0.0
    %55 = vadd.xlane.f32.xlu0 %v54
    %v56 = vpop.xlane.xlu0 %55
    %v57 = vsel %vm53, %v52, 0.0
    %58 = vadd.xlane.f32.xlu0 %v57
    %v59 = vpop.xlane.xlu0 %58
    %v60 = vrcp.pop 32.0
    %v61 = vmul.f32 32.0, %v60
    %v62 = vsub.f32 1.0, %v61
    %v63 = vmul.f32 %v60, %v62
    %v64 = vadd.f32 %v60, %v63
    %vm65 = vweird.f32 %v60
    %v66 = vsel %vm65, %v60, %v64
    %v67 = vmul.f32 %v56, %v66
    %v68 = vmul.f32 %v59, %v66
    %v69 = vsub.f32 %v51, %v67
    %v70 = vsub.f32 %v52, %v68
    %v71 = vmul.f32 %v69, %v69
    %v72 = vmul.f32 %v70, %v70
    %v73 = vsel %vm53, %v71, 0.0
    %74 = vadd.xlane.f32.xlu0 %v73
    %v75 = vpop.xlane.xlu0 %74
    %v76 = vsel %vm53, %v72, 0.0
    %77 = vadd.xlane.f32.xlu0 %v76
    %v78 = vpop.xlane.xlu0 %77
    %v79 = vmul.f32 %v75, %v66
    %v80 = vmul.f32 %v78, %v66
    %v81 = vadd.f32 %v79, 1e-05
    %v82 = vadd.f32 %v80, 1e-05
    %v83 = vrsqrt.pop %v81
    %v84 = vmul.f32 %v83, %v81
    %v85 = vmul.f32 %v84, %v83
    %v86 = vmul.f32 0.5, %v85
    %v87 = vsub.f32 1.5, %v86
    %v88 = vmul.f32 %v83, %v87
    %vm89 = vweird.f32 %v81
    %vm90 = vweird.f32 %v83
    %vm91 = vmor %vm89, %vm90
    %v92 = vsel %vm91, %v83, %v88
    %v93 = vrsqrt.pop %v82
    %v94 = vmul.f32 %v93, %v82
    %v95 = vmul.f32 %v94, %v93
    %v96 = vmul.f32 0.5, %v95
    %v97 = vsub.f32 1.5, %v96
    %v98 = vmul.f32 %v93, %v97
    %vm99 = vweird.f32 %v82
    %vm100 = vweird.f32 %v93
    %vm101 = vmor %vm99, %vm100
    %v102 = vsel %vm101, %v93, %v98
    %v103 = vmul.f32 %v69, %v92
    %v104 = vmul.f32 %v70, %v102
    %v105 = vld [vmem:[%s2] sm:$0x1]
    %v107 = vperm.slane %v105, 0
    %v109 = vmul.f32 %v103, %v107
    %v110 = vmul.f32 %v104, %v107
    %v111 = vld [vmem:[%s3] sm:$0x1]
    %v113 = vperm.slane %v111, 0
    %v115 = vadd.f32 %v109, %v113
    %v116 = vadd.f32 %v110, %v113
    %v117 = vpack.c.bf16 %v116, %v115
    %v118 = vld [vmem:[%s4] sm:$0xf]
    %v119 = vld [vmem:[%s4 + $0x4] sm:$0xf]
    %v120 = vld [vmem:[%s4 + $0x8] sm:$0xf]
    %v121 = vld [vmem:[%s4 + $0xc] sm:$0xf]
    %v122 = vld [vmem:[%s5] sm:$0x1]
    %v124 = vperm.slane %v122, 0
    %v130 = vunpack.c.l.b16 %v118
    %v131 = vunpack.c.l.b16 %v119
    %v132 = vunpack.c.l.b16 %v120
    %v133 = vunpack.c.l.b16 %v121
    %v134 = vpack.c.b16 %v131, %v130
    %v135 = vpack.c.b16 %v133, %v132
    %v139 = vsel %vm53, %v117, 0
    %141 = vmatpush.bf16.msra.mxu0 0
    %142 = vmatpush.bf16.msra.mxu0 0
    %143 = vmatpush.bf16.msra.mxu0 0
    %144 = vmatpush.bf16.msra.mxu0 0
    %145 = vmatpush.bf16.msra.mxu0 0
    %146 = vmatpush.bf16.msra.mxu0 0
    %147 = vmatpush.bf16.msra.mxu0 %v135
    %148 = vmatpush.bf16.msra.mxu0 %v134
    %149 = vmatmul.bf16.gmra.mxu0 %v139
    %v150 = vpop.f32.mrf.mxu0
    %v151 = vadd.f32 %v124, %v150
    %v152 = vpop.f32.mrf.mxu0
    %v153 = vadd.f32 %v124, %v152
    %154 = vdwg.mxu0
    %v155 = vmax.f32 %v151, 0.0
    %v156 = vmax.f32 %v153, 0.0
    %v157 = vpack.c.bf16 %v155, %v155
    %v158 = vpack.c.bf16 %v156, %v156
    %v159 = vld [vmem:[%s6] sm:$0xf]
    %v160 = vld [vmem:[%s6 + $0x4] sm:$0xf]
    %v161 = vld [vmem:[%s6 + $0x8] sm:$0xf]
    %v162 = vld [vmem:[%s6 + $0xc] sm:$0xf]
    %v163 = vld [vmem:[%s6 + $0x10] sm:$0xf]
    %v164 = vld [vmem:[%s6 + $0x14] sm:$0xf]
    %v165 = vld [vmem:[%s6 + $0x18] sm:$0xf]
    %v166 = vld [vmem:[%s6 + $0x1c] sm:$0xf]
    %v167 = vld [vmem:[%s6 + $0x20] sm:$0xf]
    %v168 = vld [vmem:[%s6 + $0x24] sm:$0xf]
    %v169 = vld [vmem:[%s6 + $0x28] sm:$0xf]
    %v170 = vld [vmem:[%s6 + $0x2c] sm:$0xf]
    %v171 = vld [vmem:[%s6 + $0x30] sm:$0xf]
    %v172 = vld [vmem:[%s6 + $0x34] sm:$0xf]
    %v173 = vld [vmem:[%s6 + $0x38] sm:$0xf]
    %v174 = vld [vmem:[%s6 + $0x3c] sm:$0xf]
    %v175 = vld [vmem:[%s7] sm:$0x1]
    %v177 = vperm.slane %v175, 0
    %v181 = vunpack.c.l.b16 %v157
    %v182 = vunpack.c.l.b16 %v158
    %v183 = vpack.c.b16 %v182, %v181
    %v201 = vunpack.c.l.b16 %v159
    %v202 = vunpack.c.l.b16 %v160
    %v203 = vunpack.c.l.b16 %v161
    %v204 = vunpack.c.l.b16 %v162
    %v205 = vunpack.c.l.b16 %v163
    %v206 = vunpack.c.l.b16 %v164
    %v207 = vunpack.c.l.b16 %v165
    %v208 = vunpack.c.l.b16 %v166
    %v209 = vunpack.c.l.b16 %v167
    %v210 = vunpack.c.l.b16 %v168
    %v211 = vunpack.c.l.b16 %v169
    %v212 = vunpack.c.l.b16 %v170
    %v213 = vunpack.c.l.b16 %v171
    %v214 = vunpack.c.l.b16 %v172
    %v215 = vunpack.c.l.b16 %v173
    %v216 = vunpack.c.l.b16 %v174
    %v217 = vpack.c.b16 %v202, %v201
    %v218 = vpack.c.b16 %v204, %v203
    %v219 = vpack.c.b16 %v206, %v205
    %v220 = vpack.c.b16 %v208, %v207
    %v221 = vpack.c.b16 %v210, %v209
    %v222 = vpack.c.b16 %v212, %v211
    %v223 = vpack.c.b16 %v214, %v213
    %v224 = vpack.c.b16 %v216, %v215
    %233 = vmatpush.bf16.msra.mxu0 %v224
    %234 = vmatpush.bf16.msra.mxu0 %v223
    %235 = vmatpush.bf16.msra.mxu0 %v222
    %236 = vmatpush.bf16.msra.mxu0 %v221
    %237 = vmatpush.bf16.msra.mxu0 %v220
    %238 = vmatpush.bf16.msra.mxu0 %v219
    %239 = vmatpush.bf16.msra.mxu0 %v218
    %240 = vmatpush.bf16.msra.mxu0 %v217
    %241 = vmatmul.bf16.gmra.mxu0 %v183
    %v242 = vpop.f32.mrf.mxu0
    %v243 = vadd.f32 %v177, %v242
    %v244 = vpop.f32.mrf.mxu0
    %v245 = vadd.f32 %v177, %v244
    %246 = vdwg.mxu0
    %v247 = vld [vmem:[#allocation2] sm:$0xff]
    %v248 = vld [vmem:[#allocation2 + $0x8] sm:$0xff]
    %v249 = vadd.f32 %v243, %v247
    %v250 = vadd.f32 %v245, %v248
    %251 = vst.msk [vmem:[#allocation5] sm:$0xff] %vm53, %v249
    %252 = vst.msk [vmem:[#allocation5 + $0x8] sm:$0xff] %vm53, %v250
    %253 = vst [vmem:[#allocation6] sm:$0xf] %v157
    %254 = vst [vmem:[#allocation6 + $0x4] sm:$0xf] %v158
    %v255 = vpack.c.bf16 %v243, %v243
    %v256 = vpack.c.bf16 %v245, %v245
    %vm257 = vcmask 257024
    %258 = vst.msk [vmem:[#allocation8] sm:$0xf] %vm257, %v255
    %259 = vst.msk [vmem:[#allocation8 + $0x4] sm:$0xf] %vm257, %v256
    // Predicated region
    $region38: #{tpu_custom_call.1} parent=1 // pred_check
      _
    $region39: #{tpu_custom_call.1} parent=1 // pred_check_branch
      %261 = sbr.rel (0) target = $region41
    $region40: #{tpu_custom_call.1} parent=1 // pred_region
      %263 = vsyncadd [#allocation4], 0
      %s264 = sshll.u32 [#allocation5], 4
      %s265 = int_to_ptr.vmem [resolvable:$true] %s264
      %s266 = sshll.u32 %s8, 4
      %s267 = int_to_ptr.hbm [resolvable:$true] %s266
      %272 = dma.vmem_to_hbm [thread:$0]  %s265, 256, %s267, [#allocation4], 128, 128, 8
    $region41: #{tpu_custom_call.1} parent=1 // pred_fallthru
      _
    // Predicated region
    $region42: #{tpu_custom_call.1} parent=1 // pred_check
      _
    $region43: #{tpu_custom_call.1} parent=1 // pred_check_branch
      %274 = sbr.rel (0) target = $region45
    $region44: #{tpu_custom_call.1} parent=1 // pred_region
      %276 = vsyncadd [#allocation7], 0
      %s277 = sshll.u32 [#allocation6], 4
      %s278 = int_to_ptr.vmem [resolvable:$true] %s277
      %s279 = sshll.u32 %s9, 4
      %s280 = int_to_ptr.hbm [resolvable:$true] %s279
      %285 = dma.vmem_to_hbm [thread:$0]  %s278, 128, %s280, [#allocation7], 64, 64, 4
    $region45: #{tpu_custom_call.1} parent=1 // pred_fallthru
      _
    // Predicated region
    $region46: #{tpu_custom_call.1} parent=1 // pred_check
      _
    $region47: #{tpu_custom_call.1} parent=1 // pred_check_branch
      %287 = sbr.rel (0) target = $region49
    $region48: #{tpu_custom_call.1} parent=1 // pred_region
      %289 = vsyncadd [#allocation7], 0
      %s290 = sshll.u32 [#allocation8], 4
      %s291 = int_to_ptr.vmem [resolvable:$true] %s290
      %s292 = sshll.u32 %s10, 4
      %s293 = int_to_ptr.hbm [resolvable:$true] %s292
      %298 = dma.vmem_to_hbm [thread:$0]  %s291, 128, %s293, [#allocation7], 64, 64, 4
    $region49: #{tpu_custom_call.1} parent=1 // pred_fallthru
      _
    // Predicated region
    $region50: #{tpu_custom_call.1} parent=1 // pred_check
      _
    $region51: #{tpu_custom_call.1} parent=1 // pred_check_branch
      %300 = sbr.rel (0) target = $region53
    $region52: #{tpu_custom_call.1} parent=1 // pred_region
      %302 = dma.done [#allocation4], 256
    $region53: #{tpu_custom_call.1} parent=1 // pred_fallthru
      _
    // Predicated region
    $region54: #{tpu_custom_call.1} parent=1 // pred_check
      _
    $region55: #{tpu_custom_call.1} parent=1 // pred_check_branch
      %304 = sbr.rel (0) target = $region57
    $region56: #{tpu_custom_call.1} parent=1 // pred_region
      %306 = dma.done [#allocation7], 128
    $region57: #{tpu_custom_call.1} parent=1 // pred_fallthru
      _
    // Predicated region
    $region58: #{tpu_custom_call.1} parent=1 // pred_check
      _
    $region59: #{tpu_custom_call.1} parent=1 // pred_check_branch
      %308 = sbr.rel (0) target = $region61
    $region60: #{tpu_custom_call.1} parent=1 // pred_region
      %310 = dma.done [#allocation7], 128
    $region61: #{tpu_custom_call.1} parent=1 // pred_fallthru
      _
    %311 = vsyncpa [#allocation3], 1
    %312 = vsyncpa [#allocation4], 1
    %313 = vsyncpa [#allocation7], 1

</llo_original>
